<compile_context>
chip_gen: v7x
topology: tpu7x:2x2x1
jax: 0.10.0
libtpu: 0.0.40
codegen_flags: <defaults>
</compile_context>

<pallas_src>
import functools

import jax
import jax.numpy as jnp
from jax.experimental import pallas as pl
from jax.experimental.pallas import tpu as pltpu


def _coupling_kernel(z_ref, mask_ref, w1_ref, b1_ref, w2s_ref, w2t_ref,
                     b2s_ref, b2t_ref, sfac_ref, isfac_ref,
                     z_out_ref, dldj_ref, *,
                     reverse: bool, batch_block: int, pixel_tile: int,
                     n_pixel_tiles: int):
    """grid = (batch-block, pixel-tile); both axes are fully parallel."""
    j = pl.program_id(1)

    # Grid-invariant mask: full (C, HW) block resident in VMEM, slice our tile.
    if n_pixel_tiles == 1:
        mask = mask_ref[...]                               # (C, T) == (C, HW)
    else:
        start = pl.multiple_of(j * pixel_tile, 128)        # T % 128 == 0 here
        mask = mask_ref[:, pl.ds(start, pixel_tile)]       # (C, T)
    inv_mask = 1.0 - mask                                  # in-kernel, no HBM stream

    w1 = w1_ref[...]            # (HID, C)
    b1 = b1_ref[...]            # (HID, 1)
    w2s = w2s_ref[...]          # (C, HID)
    w2t = w2t_ref[...]          # (C, HID)
    b2s = b2s_ref[...]          # (C, 1)
    b2t = b2t_ref[...]          # (C, 1)
    s_fac = sfac_ref[...]       # (C, 1)   == exp(scaling_factor)
    inv_s_fac = isfac_ref[...]  # (C, 1)

    deltas = []
    for b in range(batch_block):            # static unroll over the batch block
        z = z_ref[b]                        # (C, T)  f32, pixels on lanes
        z_in = z * mask

        # network: per-pixel MLP == stacked 1x1 convs; pixels stay on lanes.
        h = jnp.dot(w1, z_in, preferred_element_type=jnp.float32) + b1
        h = jnp.maximum(h, 0.0)                                       # (HID, T)
        s = jnp.dot(w2s, h, preferred_element_type=jnp.float32) + b2s  # (C, T)
        t = jnp.dot(w2t, h, preferred_element_type=jnp.float32) + b2t  # (C, T)

        # scaling-factor-stabilized tanh: s = tanh(s / s_fac) * s_fac
        s = jnp.tanh(s * inv_s_fac) * s_fac
        s = s * inv_mask
        t = t * inv_mask

        if not reverse:
            z_new = (z + t) * jnp.exp(s)
        else:
            z_new = z * jnp.exp(-s) - t

        z_out_ref[b] = z_new.astype(z_out_ref.dtype)
        deltas.append(jnp.sum(s, keepdims=True))            # (1, 1) tile sum

    # Per-(batch-block, pixel-tile) log-det partials; signed & summed in wrapper.
    dldj_ref[...] = jnp.concatenate(deltas, axis=1).reshape(1, 1, batch_block)


def _vmem_cap_bytes() -> int:
    """Generation-aware VMEM budget (headroom on v7x's 64 MiB physical)."""
    try:
        info = pltpu.get_tpu_info()
        phys = int(getattr(info, "vmem_capacity_bytes", 128 * 1024 * 1024))
    except Exception:
        phys = 64 * 1024 * 1024            # unknown -> assume smallest (v7x)
    if phys <= 64 * 1024 * 1024:
        return 48 * 1024 * 1024            # v7x: leave compiler-scratch headroom
    return 100 * 1024 * 1024               # v5e / v6e (128 MiB physical)


def _vmem_estimate_bytes(bb: int, c: int, t: int, hw: int, hid: int) -> int:
    f32 = 4
    z_block = bb * c * t * f32
    return int(
        2 * z_block + 2 * z_block                       # z in + z out (double-buffered)
        + 2 * c * hw * f32                              # grid-invariant mask
        + 2 * (hid * c + 2 * c * hid + hid + 4 * c) * f32  # weights / biases / s_fac
        + 2 * (hid + 6 * c) * t * f32                   # matmul / elementwise temps
        + 4096)                                         # ldj partials + slack


def _choose_tiles(b: int, c: int, hw: int, hid: int, cap_bytes: int, *,
                  target_block_bytes: int = 2 << 20, max_batch_block: int = 16):
    """Pick (batch_block, pixel_tile) so z blocks are large (amortize the
    ~0.35us grid-step overhead) but fit the generation-aware VMEM budget."""
    f32 = 4
    if c * hw * f32 <= target_block_bytes:
        t = hw
    else:
        t = hw  # fallback when HW has no multiple-of-128 divisor
        cand = min(hw, (target_block_bytes // (c * f32)) // 128 * 128)
        while cand >= 128:
            if hw % cand == 0:
                t = cand
                break
            cand -= 128
    bb = 1
    for cand in range(min(b, max_batch_block), 0, -1):
        if b % cand == 0 and cand * c * t * f32 <= target_block_bytes:
            bb = cand
            break
    while bb > 1 and _vmem_estimate_bytes(bb, c, t, hw, hid) > cap_bytes:
        bb -= 1
        while bb > 1 and b % bb != 0:
            bb -= 1
    return bb, t


def coupling_layer_forward(z_nchw, ldj, params, mask_chw, *, reverse=False,
                           pixel_tile=None, batch_block=None):
    """z_nchw: (B, C, H, W) f32, ldj: (B,) f32, mask_chw: (C, H, W) f32."""
    B, C, H, W = z_nchw.shape
    HW = H * W
    HID = params["w1"].shape[1]

    cap = _vmem_cap_bytes()
    auto_bb, auto_t = _choose_tiles(B, C, HW, HID, cap)
    T = auto_t if pixel_tile is None else int(pixel_tile)
    Bb = auto_bb if batch_block is None else int(batch_block)
    assert HW % T == 0, "pixel_tile must divide H*W"
    assert T == HW or T % 128 == 0, "pixel_tile must be a multiple of 128 or == H*W"
    assert B % Bb == 0, "batch_block must divide the batch size"
    nb, nj = B // Bb, HW // T

    # Lane-dense layout: NCHW -> (B, C, HW) is a pure reshape (no transpose).
    z_flat = z_nchw.reshape(B, C, HW).astype(jnp.float32)
    mask_flat = mask_chw.reshape(C, HW).astype(jnp.float32)

    # Hoisted constants; weights transposed so pixels stay on the lane axis.
    s_fac = jnp.exp(params["scaling_factor"]).reshape(C, 1).astype(jnp.float32)
    inv_s_fac = 1.0 / s_fac
    w1_t = params["w1"].T.astype(jnp.float32)                    # (HID, C)
    b1_c = params["b1"].reshape(HID, 1).astype(jnp.float32)      # (HID, 1)
    w2s_t = params["w2_s"].T.astype(jnp.float32)                 # (C, HID)
    w2t_t = params["w2_t"].T.astype(jnp.float32)                 # (C, HID)
    b2s_c = params["b2_s"].reshape(C, 1).astype(jnp.float32)     # (C, 1)
    b2t_c = params["b2_t"].reshape(C, 1).astype(jnp.float32)     # (C, 1)

    kernel = functools.partial(_coupling_kernel, reverse=reverse,
                               batch_block=Bb, pixel_tile=T, n_pixel_tiles=nj)

    vmem_limit = int(min(cap, max(32 << 20,
                                  2 * _vmem_estimate_bytes(Bb, C, T, HW, HID))))

    grid_spec = pltpu.PrefetchScalarGridSpec(
        num_scalar_prefetch=0,
        grid=(nb, nj),
        in_specs=[
            pl.BlockSpec((Bb, C, T), lambda bi, j: (bi, 0, j)),   # z
            pl.BlockSpec((C, HW), lambda bi, j: (0, 0)),          # mask (grid-invariant)
            pl.BlockSpec((HID, C), lambda bi, j: (0, 0)),         # w1^T
            pl.BlockSpec((HID, 1), lambda bi, j: (0, 0)),         # b1
            pl.BlockSpec((C, HID), lambda bi, j: (0, 0)),         # w2_s^T
            pl.BlockSpec((C, HID), lambda bi, j: (0, 0)),         # w2_t^T
            pl.BlockSpec((C, 1), lambda bi, j: (0, 0)),           # b2_s
            pl.BlockSpec((C, 1), lambda bi, j: (0, 0)),           # b2_t
            pl.BlockSpec((C, 1), lambda bi, j: (0, 0)),           # s_fac
            pl.BlockSpec((C, 1), lambda bi, j: (0, 0)),           # 1 / s_fac
        ],
        out_specs=[
            pl.BlockSpec((Bb, C, T), lambda bi, j: (bi, 0, j)),   # z out
            pl.BlockSpec((1, 1, Bb), lambda bi, j: (bi, j, 0)),   # ldj partials
        ],
    )

    z_out_flat, dldj = pl.pallas_call(
        kernel,
        grid_spec=grid_spec,
        out_shape=(
            jax.ShapeDtypeStruct((B, C, HW), jnp.float32),
            jax.ShapeDtypeStruct((nb, nj, Bb), jnp.float32),
        ),
        compiler_params=pltpu.CompilerParams(
            dimension_semantics=("parallel", "parallel"),
            vmem_limit_bytes=vmem_limit),
    )(z_flat, mask_flat, w1_t, b1_c, w2s_t, w2t_t, b2s_c, b2t_c, s_fac, inv_s_fac)

    # Incoming ldj and the sign are handled in the wrapper (kernel only emits
    # per-tile partial sums of s).
    sign = -1.0 if reverse else 1.0
    delta = jnp.sum(dldj, axis=1).reshape(B)        # (nb, Bb) -> (B,), bi-major order
    ldj_out = ldj.astype(jnp.float32) + sign * delta

    return z_out_flat.reshape(B, C, H, W), ldj_out


def coupling_layer_reference(z_nchw, ldj, params, mask_chw, *, reverse=False):
    """Pure-JAX reference mirroring the PyTorch forward (NCHW, f32)."""
    mask = mask_chw[None]                                   # (1, C, H, W)
    z_in = z_nchw * mask

    # network: 1x1 conv -> ReLU -> 1x1 conv (as per-pixel matmuls)
    x = jnp.transpose(z_in, (0, 2, 3, 1))                   # (B, H, W, C)
    h = jnp.maximum(x @ params["w1"] + params["b1"][0], 0.0)
    s = h @ params["w2_s"] + params["b2_s"][0]
    t = h @ params["w2_t"] + params["b2_t"][0]
    s = jnp.transpose(s, (0, 3, 1, 2))                      # (B, C, H, W)
    t = jnp.transpose(t, (0, 3, 1, 2))

    s_fac = jnp.exp(params["scaling_factor"][0]).reshape(1, -1, 1, 1)
    s = jnp.tanh(s / s_fac) * s_fac
    s = s * (1.0 - mask)
    t = t * (1.0 - mask)
    if not reverse:
        z = (z_nchw + t) * jnp.exp(s)
        ldj = ldj + jnp.sum(s, axis=(1, 2, 3))
    else:
        z = z_nchw * jnp.exp(-s) - t
        ldj = ldj - jnp.sum(s, axis=(1, 2, 3))
    return z, ldj


if __name__ == "__main__":
    B, C, H, W = 2, 4, 16, 16
    HID = 32

    key = jax.random.PRNGKey(0)
    k_z, k_ldj, k_w1, k_b1, k_w2, k_b2, k_sf = jax.random.split(key, 7)

    z = jax.random.normal(k_z, (B, C, H, W), dtype=jnp.float32)
    ldj = jax.random.normal(k_ldj, (B,), dtype=jnp.float32)

    # Deterministic synthetic "network" parameters (two 1x1 convs + ReLU).
    w1 = 0.1 * jax.random.normal(k_w1, (C, HID), dtype=jnp.float32)
    b1 = 0.1 * jax.random.normal(k_b1, (1, HID), dtype=jnp.float32)
    w2 = 0.1 * jax.random.normal(k_w2, (HID, 2 * C), dtype=jnp.float32)
    b2 = 0.1 * jax.random.normal(k_b2, (1, 2 * C), dtype=jnp.float32)
    # nn_out.chunk(2, dim=1): first C output channels -> s, last C -> t.
    params = {
        "w1": w1, "b1": b1,
        "w2_s": w2[:, :C], "b2_s": b2[:, :C],
        "w2_t": w2[:, C:], "b2_t": b2[:, C:],
        # module init is zeros; small random values exercise the tanh/s_fac path
        "scaling_factor": 0.1 * jax.random.normal(k_sf, (1, C), dtype=jnp.float32),
    }

    # Checkerboard binary mask, shared across channels (shape (C, H, W)).
    cb = ((jnp.arange(H)[:, None] + jnp.arange(W)[None, :]) % 2).astype(jnp.float32)
    mask = jnp.broadcast_to(cb[None], (C, H, W))

    z_ref, ldj_ref = coupling_layer_reference(z, ldj, params, mask, reverse=False)

    # --- forward (auto tiling: batch-blocked, full pixel axis) vs reference ---
    z_out, ldj_out = coupling_layer_forward(z, ldj, params, mask, reverse=False)
    jax.block_until_ready((z_out, ldj_out))
    assert jnp.allclose(z_out, z_ref, atol=1e-5, rtol=1e-5)
    assert jnp.allclose(ldj_out, ldj_ref, atol=1e-4, rtol=1e-5)

    # --- reverse (inverse) round trip ---
    z_rev, ldj_rev = coupling_layer_forward(z_out, ldj_out, params, mask, reverse=True)
    jax.block_until_ready((z_rev, ldj_rev))
    assert jnp.allclose(z_rev, z, atol=1e-4, rtol=1e-4)
    assert jnp.allclose(ldj_rev, ldj, atol=1e-4, rtol=1e-4)

    # --- channel-split mask: exercises data-dependent coupling ---
    ch_mask = jnp.broadcast_to(
        (jnp.arange(C) < C // 2).astype(jnp.float32)[:, None, None], (C, H, W))
    z_out_c, ldj_out_c = coupling_layer_forward(z, ldj, params, ch_mask, reverse=False)
    jax.block_until_ready((z_out_c, ldj_out_c))
    z_ref_c, ldj_ref_c = coupling_layer_reference(z, ldj, params, ch_mask, reverse=False)
    assert jnp.allclose(z_out_c, z_ref_c, atol=1e-5, rtol=1e-5)
    assert jnp.allclose(ldj_out_c, ldj_ref_c, atol=1e-4, rtol=1e-5)

    # --- multi-pixel-tile path (dynamic in-kernel mask slice, ldj partials) ---
    z_out_t, ldj_out_t = coupling_layer_forward(z, ldj, params, mask, reverse=False,
                                                pixel_tile=128)
    jax.block_until_ready((z_out_t, ldj_out_t))
    assert jnp.allclose(z_out_t, z_ref, atol=1e-5, rtol=1e-5)
    assert jnp.allclose(ldj_out_t, ldj_ref, atol=1e-4, rtol=1e-5)

    # --- single-batch blocks + multi tiles (exercises Bb < B path) ---
    z_out_b, ldj_out_b = coupling_layer_forward(z, ldj, params, mask, reverse=False,
                                                pixel_tile=128, batch_block=1)
    jax.block_until_ready((z_out_b, ldj_out_b))
    assert jnp.allclose(z_out_b, z_ref, atol=1e-5, rtol=1e-5)
    assert jnp.allclose(ldj_out_b, ldj_ref, atol=1e-4, rtol=1e-5)

    print("KERNEL_OK")
</pallas_src>

<mosaic_0001>
module attributes {stable_mosaic.version = 11 : i64} {
  func.func @_coupling_kernel(%arg0: i32, %arg1: i32, %arg2: memref<2x4x256xf32, #tpu.memory_space<vmem>>, %arg3: memref<4x256xf32, #tpu.memory_space<vmem>>, %arg4: memref<32x4xf32, #tpu.memory_space<vmem>>, %arg5: memref<32x1xf32, #tpu.memory_space<vmem>>, %arg6: memref<4x32xf32, #tpu.memory_space<vmem>>, %arg7: memref<4x32xf32, #tpu.memory_space<vmem>>, %arg8: memref<4x1xf32, #tpu.memory_space<vmem>>, %arg9: memref<4x1xf32, #tpu.memory_space<vmem>>, %arg10: memref<4x1xf32, #tpu.memory_space<vmem>>, %arg11: memref<4x1xf32, #tpu.memory_space<vmem>>, %arg12: memref<2x4x256xf32, #tpu.memory_space<vmem>>, %arg13: memref<1x1x2xf32, #tpu.memory_space<vmem>>) attributes {dimension_semantics = [#tpu.dimension_semantics<parallel>, #tpu.dimension_semantics<parallel>], iteration_bounds = array<i64: 1, 1>, scalar_prefetch = 0 : i64, scratch_operands = 0 : i64, tpu.core_type = #tpu.core_type<tc>, window_params = [{transform_indices = @transform_0, window_bounds = array<i64: 2, 4, 256>}, {pipeline_mode = #tpu.pipeline_mode<synchronous>, transform_indices = @transform_1, window_bounds = array<i64: 4, 256>}, {pipeline_mode = #tpu.pipeline_mode<synchronous>, transform_indices = @transform_2, window_bounds = array<i64: 32, 4>}, {pipeline_mode = #tpu.pipeline_mode<synchronous>, transform_indices = @transform_3, window_bounds = array<i64: 32, 1>}, {pipeline_mode = #tpu.pipeline_mode<synchronous>, transform_indices = @transform_4, window_bounds = array<i64: 4, 32>}, {pipeline_mode = #tpu.pipeline_mode<synchronous>, transform_indices = @transform_5, window_bounds = array<i64: 4, 32>}, {pipeline_mode = #tpu.pipeline_mode<synchronous>, transform_indices = @transform_6, window_bounds = array<i64: 4, 1>}, {pipeline_mode = #tpu.pipeline_mode<synchronous>, transform_indices = @transform_7, window_bounds = array<i64: 4, 1>}, {pipeline_mode = #tpu.pipeline_mode<synchronous>, transform_indices = @transform_8, window_bounds = array<i64: 4, 1>}, {pipeline_mode = #tpu.pipeline_mode<synchronous>, transform_indices = @transform_9, window_bounds = array<i64: 4, 1>}, {transform_indices = @transform_10, window_bounds = array<i64: 2, 4, 256>}, {transform_indices = @transform_11, window_bounds = array<i64: 1, 1, 2>}]} {
    %c0 = arith.constant 0 : index
    %c0_0 = arith.constant 0 : index
    %0 = vector.load %arg3[%c0, %c0_0] : memref<4x256xf32, #tpu.memory_space<vmem>>, vector<4x256xf32>
    %cst = arith.constant 1.000000e+00 : f32
    %1 = vector.broadcast %cst : f32 to vector<4x256xf32>
    %2 = arith.subf %1, %0 : vector<4x256xf32>
    %c0_1 = arith.constant 0 : index
    %c0_2 = arith.constant 0 : index
    %3 = vector.load %arg4[%c0_1, %c0_2] : memref<32x4xf32, #tpu.memory_space<vmem>>, vector<32x4xf32>
    %c0_3 = arith.constant 0 : index
    %c0_4 = arith.constant 0 : index
    %4 = vector.load %arg5[%c0_3, %c0_4] : memref<32x1xf32, #tpu.memory_space<vmem>>, vector<32x1xf32>
    %c0_5 = arith.constant 0 : index
    %c0_6 = arith.constant 0 : index
    %5 = vector.load %arg6[%c0_5, %c0_6] : memref<4x32xf32, #tpu.memory_space<vmem>>, vector<4x32xf32>
    %c0_7 = arith.constant 0 : index
    %c0_8 = arith.constant 0 : index
    %6 = vector.load %arg7[%c0_7, %c0_8] : memref<4x32xf32, #tpu.memory_space<vmem>>, vector<4x32xf32>
    %c0_9 = arith.constant 0 : index
    %c0_10 = arith.constant 0 : index
    %7 = vector.load %arg8[%c0_9, %c0_10] : memref<4x1xf32, #tpu.memory_space<vmem>>, vector<4x1xf32>
    %c0_11 = arith.constant 0 : index
    %c0_12 = arith.constant 0 : index
    %8 = vector.load %arg9[%c0_11, %c0_12] : memref<4x1xf32, #tpu.memory_space<vmem>>, vector<4x1xf32>
    %c0_13 = arith.constant 0 : index
    %c0_14 = arith.constant 0 : index
    %9 = vector.load %arg10[%c0_13, %c0_14] : memref<4x1xf32, #tpu.memory_space<vmem>>, vector<4x1xf32>
    %c0_15 = arith.constant 0 : index
    %c0_16 = arith.constant 0 : index
    %10 = vector.load %arg11[%c0_15, %c0_16] : memref<4x1xf32, #tpu.memory_space<vmem>>, vector<4x1xf32>
    %c0_17 = arith.constant 0 : index
    %c0_18 = arith.constant 0 : index
    %c0_19 = arith.constant 0 : index
    %11 = vector.load %arg2[%c0_17, %c0_18, %c0_19] : memref<2x4x256xf32, #tpu.memory_space<vmem>>, vector<1x4x256xf32>
    %12 = vector.shape_cast %11 : vector<1x4x256xf32> to vector<4x256xf32>
    %13 = arith.mulf %12, %0 : vector<4x256xf32>
    %cst_20 = arith.constant dense<0.000000e+00> : vector<32x256xf32>
    %14 = tpu.matmul %3, %13, %cst_20 {dimension_numbers = #tpu.dot_dimension_numbers<[1], [0], [0], [1], [0, 0, 1, 1], [], []>} : vector<32x4xf32>, vector<4x256xf32>, vector<32x256xf32> -> vector<32x256xf32>
    %15 = vector.broadcast %4 : vector<32x1xf32> to vector<32x256xf32>
    %16 = arith.addf %14, %15 : vector<32x256xf32>
    %cst_21 = arith.constant 0.000000e+00 : f32
    %17 = vector.broadcast %cst_21 : f32 to vector<32x256xf32>
    %18 = arith.maximumf %16, %17 : vector<32x256xf32>
    %cst_22 = arith.constant dense<0.000000e+00> : vector<4x256xf32>
    %19 = tpu.matmul %5, %18, %cst_22 {dimension_numbers = #tpu.dot_dimension_numbers<[1], [0], [0], [1], [0, 0, 1, 1], [], []>} : vector<4x32xf32>, vector<32x256xf32>, vector<4x256xf32> -> vector<4x256xf32>
    %20 = vector.broadcast %7 : vector<4x1xf32> to vector<4x256xf32>
    %21 = arith.addf %19, %20 : vector<4x256xf32>
    %cst_23 = arith.constant dense<0.000000e+00> : vector<4x256xf32>
    %22 = tpu.matmul %6, %18, %cst_23 {dimension_numbers = #tpu.dot_dimension_numbers<[1], [0], [0], [1], [0, 0, 1, 1], [], []>} : vector<4x32xf32>, vector<32x256xf32>, vector<4x256xf32> -> vector<4x256xf32>
    %23 = vector.broadcast %8 : vector<4x1xf32> to vector<4x256xf32>
    %24 = arith.addf %22, %23 : vector<4x256xf32>
    %25 = vector.broadcast %10 : vector<4x1xf32> to vector<4x256xf32>
    %26 = arith.mulf %21, %25 : vector<4x256xf32>
    %27 = math.tanh %26 : vector<4x256xf32>
    %28 = vector.broadcast %9 : vector<4x1xf32> to vector<4x256xf32>
    %29 = arith.mulf %27, %28 : vector<4x256xf32>
    %30 = arith.mulf %29, %2 : vector<4x256xf32>
    %31 = arith.mulf %24, %2 : vector<4x256xf32>
    %32 = arith.addf %12, %31 : vector<4x256xf32>
    %33 = math.exp %30 : vector<4x256xf32>
    %34 = arith.mulf %32, %33 : vector<4x256xf32>
    %c0_24 = arith.constant 0 : index
    %c0_25 = arith.constant 0 : index
    %c0_26 = arith.constant 0 : index
    %35 = vector.load %arg12[%c0_24, %c0_25, %c0_26] : memref<2x4x256xf32, #tpu.memory_space<vmem>>, vector<1x4x256xf32>
    %36 = vector.shape_cast %35 : vector<1x4x256xf32> to vector<4x256xf32>
    %37 = vector.shape_cast %34 : vector<4x256xf32> to vector<1x4x256xf32>
    tpu.vector_store %arg12[%c0_24, %c0_25, %c0_26], %37 {strides = array<i32>} : memref<2x4x256xf32, #tpu.memory_space<vmem>>, vector<1x4x256xf32>,
    %38 = vector.shape_cast %30 : vector<4x256xf32> to vector<1x4x256xf32>
    %cst_27 = arith.constant dense<0.000000e+00> : vector<1xf32>
    %39 = vector.multi_reduction <add>, %38, %cst_27 [1, 2] : vector<1x4x256xf32> to vector<1xf32>
    %40 = vector.shape_cast %39 : vector<1xf32> to vector<1x1x1xf32>
    %41 = vector.extract %40[0, 0, 0] : f32 from vector<1x1x1xf32>
    %42 = vector.broadcast %41 : f32 to vector<1x1xf32>
    %c1 = arith.constant 1 : index
    %c0_28 = arith.constant 0 : index
    %c0_29 = arith.constant 0 : index
    %43 = vector.load %arg2[%c1, %c0_28, %c0_29] : memref<2x4x256xf32, #tpu.memory_space<vmem>>, vector<1x4x256xf32>
    %44 = vector.shape_cast %43 : vector<1x4x256xf32> to vector<4x256xf32>
    %45 = arith.mulf %44, %0 : vector<4x256xf32>
    %cst_30 = arith.constant dense<0.000000e+00> : vector<32x256xf32>
    %46 = tpu.matmul %3, %45, %cst_30 {dimension_numbers = #tpu.dot_dimension_numbers<[1], [0], [0], [1], [0, 0, 1, 1], [], []>} : vector<32x4xf32>, vector<4x256xf32>, vector<32x256xf32> -> vector<32x256xf32>
    %47 = vector.broadcast %4 : vector<32x1xf32> to vector<32x256xf32>
    %48 = arith.addf %46, %47 : vector<32x256xf32>
    %cst_31 = arith.constant 0.000000e+00 : f32
    %49 = vector.broadcast %cst_31 : f32 to vector<32x256xf32>
    %50 = arith.maximumf %48, %49 : vector<32x256xf32>
    %cst_32 = arith.constant dense<0.000000e+00> : vector<4x256xf32>
    %51 = tpu.matmul %5, %50, %cst_32 {dimension_numbers = #tpu.dot_dimension_numbers<[1], [0], [0], [1], [0, 0, 1, 1], [], []>} : vector<4x32xf32>, vector<32x256xf32>, vector<4x256xf32> -> vector<4x256xf32>
    %52 = vector.broadcast %7 : vector<4x1xf32> to vector<4x256xf32>
    %53 = arith.addf %51, %52 : vector<4x256xf32>
    %cst_33 = arith.constant dense<0.000000e+00> : vector<4x256xf32>
    %54 = tpu.matmul %6, %50, %cst_33 {dimension_numbers = #tpu.dot_dimension_numbers<[1], [0], [0], [1], [0, 0, 1, 1], [], []>} : vector<4x32xf32>, vector<32x256xf32>, vector<4x256xf32> -> vector<4x256xf32>
    %55 = vector.broadcast %8 : vector<4x1xf32> to vector<4x256xf32>
    %56 = arith.addf %54, %55 : vector<4x256xf32>
    %57 = vector.broadcast %10 : vector<4x1xf32> to vector<4x256xf32>
    %58 = arith.mulf %53, %57 : vector<4x256xf32>
    %59 = math.tanh %58 : vector<4x256xf32>
    %60 = vector.broadcast %9 : vector<4x1xf32> to vector<4x256xf32>
    %61 = arith.mulf %59, %60 : vector<4x256xf32>
    %62 = arith.mulf %61, %2 : vector<4x256xf32>
    %63 = arith.mulf %56, %2 : vector<4x256xf32>
    %64 = arith.addf %44, %63 : vector<4x256xf32>
    %65 = math.exp %62 : vector<4x256xf32>
    %66 = arith.mulf %64, %65 : vector<4x256xf32>
    %c1_34 = arith.constant 1 : index
    %c0_35 = arith.constant 0 : index
    %c0_36 = arith.constant 0 : index
    %67 = vector.load %arg12[%c1_34, %c0_35, %c0_36] : memref<2x4x256xf32, #tpu.memory_space<vmem>>, vector<1x4x256xf32>
    %68 = vector.shape_cast %67 : vector<1x4x256xf32> to vector<4x256xf32>
    %69 = vector.shape_cast %66 : vector<4x256xf32> to vector<1x4x256xf32>
    tpu.vector_store %arg12[%c1_34, %c0_35, %c0_36], %69 {strides = array<i32>} : memref<2x4x256xf32, #tpu.memory_space<vmem>>, vector<1x4x256xf32>,
    %70 = vector.shape_cast %62 : vector<4x256xf32> to vector<1x4x256xf32>
    %cst_37 = arith.constant dense<0.000000e+00> : vector<1xf32>
    %71 = vector.multi_reduction <add>, %70, %cst_37 [1, 2] : vector<1x4x256xf32> to vector<1xf32>
    %72 = vector.shape_cast %71 : vector<1xf32> to vector<1x1x1xf32>
    %73 = vector.extract %72[0, 0, 0] : f32 from vector<1x1x1xf32>
    %74 = vector.broadcast %73 : f32 to vector<1x1xf32>
    %75 = tpu.concatenate %42, %74 in 1 : vector<1x1xf32>, vector<1x1xf32> -> vector<1x2xf32>
    %76 = vector.shape_cast %75 : vector<1x2xf32> to vector<1x1x2xf32>
    %c0_38 = arith.constant 0 : index
    %c0_39 = arith.constant 0 : index
    %c0_40 = arith.constant 0 : index
    %77 = vector.load %arg13[%c0_38, %c0_39, %c0_40] : memref<1x1x2xf32, #tpu.memory_space<vmem>>, vector<1x1x2xf32>
    tpu.vector_store %arg13[%c0_38, %c0_39, %c0_40], %76 {strides = array<i32>} : memref<1x1x2xf32, #tpu.memory_space<vmem>>, vector<1x1x2xf32>,
    return
  }
  func.func @transform_0(%arg0: i32, %arg1: i32) -> (i32, i32, i32) {
    %c0_i32 = arith.constant 0 : i32
    %c0_i32_0 = arith.constant 0 : i32
    return %arg0, %c0_i32, %arg1 : i32, i32, i32
  }
  func.func @transform_1(%arg0: i32, %arg1: i32) -> (i32, i32) {
    %c0_i32 = arith.constant 0 : i32
    %c0_i32_0 = arith.constant 0 : i32
    %c0_i32_1 = arith.constant 0 : i32
    return %c0_i32, %c0_i32_0 : i32, i32
  }
  func.func @transform_2(%arg0: i32, %arg1: i32) -> (i32, i32) {
    %c0_i32 = arith.constant 0 : i32
    %c0_i32_0 = arith.constant 0 : i32
    %c0_i32_1 = arith.constant 0 : i32
    return %c0_i32, %c0_i32_0 : i32, i32
  }
  func.func @transform_3(%arg0: i32, %arg1: i32) -> (i32, i32) {
    %c0_i32 = arith.constant 0 : i32
    %c0_i32_0 = arith.constant 0 : i32
    %c0_i32_1 = arith.constant 0 : i32
    return %c0_i32, %c0_i32_0 : i32, i32
  }
  func.func @transform_4(%arg0: i32, %arg1: i32) -> (i32, i32) {
    %c0_i32 = arith.constant 0 : i32
    %c0_i32_0 = arith.constant 0 : i32
    %c0_i32_1 = arith.constant 0 : i32
    return %c0_i32, %c0_i32_0 : i32, i32
  }
  func.func @transform_5(%arg0: i32, %arg1: i32) -> (i32, i32) {
    %c0_i32 = arith.constant 0 : i32
    %c0_i32_0 = arith.constant 0 : i32
    %c0_i32_1 = arith.constant 0 : i32
    return %c0_i32, %c0_i32_0 : i32, i32
  }
  func.func @transform_6(%arg0: i32, %arg1: i32) -> (i32, i32) {
    %c0_i32 = arith.constant 0 : i32
    %c0_i32_0 = arith.constant 0 : i32
    %c0_i32_1 = arith.constant 0 : i32
    return %c0_i32, %c0_i32_0 : i32, i32
  }
  func.func @transform_7(%arg0: i32, %arg1: i32) -> (i32, i32) {
    %c0_i32 = arith.constant 0 : i32
    %c0_i32_0 = arith.constant 0 : i32
    %c0_i32_1 = arith.constant 0 : i32
    return %c0_i32, %c0_i32_0 : i32, i32
  }
  func.func @transform_8(%arg0: i32, %arg1: i32) -> (i32, i32) {
    %c0_i32 = arith.constant 0 : i32
    %c0_i32_0 = arith.constant 0 : i32
    %c0_i32_1 = arith.constant 0 : i32
    return %c0_i32, %c0_i32_0 : i32, i32
  }
  func.func @transform_9(%arg0: i32, %arg1: i32) -> (i32, i32) {
    %c0_i32 = arith.constant 0 : i32
    %c0_i32_0 = arith.constant 0 : i32
    %c0_i32_1 = arith.constant 0 : i32
    return %c0_i32, %c0_i32_0 : i32, i32
  }
  func.func @transform_10(%arg0: i32, %arg1: i32) -> (i32, i32, i32) {
    %c0_i32 = arith.constant 0 : i32
    %c0_i32_0 = arith.constant 0 : i32
    return %arg0, %c0_i32, %arg1 : i32, i32, i32
  }
  func.func @transform_11(%arg0: i32, %arg1: i32) -> (i32, i32, i32) {
    %c0_i32 = arith.constant 0 : i32
    %c0_i32_0 = arith.constant 0 : i32
    return %arg0, %arg1, %c0_i32 : i32, i32, i32
  }
}

</mosaic_0001>

<llo_original>
// kernel: tpu_custom_call.1
$region0: #{tpu_custom_call.1}
  #allocation0 [shape = 'u32[]', space=smem, size = 0x4, offset = 0x4, fixed_abs, tag = 'smem constant byte address 0x4 - core index']
  #allocation1 [shape = 'u32[144,128]{1,0:T(1,128)}', space=vmem, size = 0x12000, scoped, tag = 'internal scratch']
  %s0 = inlined_call_operand.vmem [shape: f32[2,4,256], index: 0, kind: input, shape index: {}]
  %s1 = inlined_call_operand.vmem [shape: f32[4,256], index: 1, kind: input, shape index: {}]
  %s2 = inlined_call_operand.vmem [shape: f32[32,4], index: 2, kind: input, shape index: {}]
  %s3 = inlined_call_operand.vmem [shape: f32[32,1], index: 3, kind: input, shape index: {}]
  %s4 = inlined_call_operand.vmem [shape: f32[4,32], index: 4, kind: input, shape index: {}]
  %s5 = inlined_call_operand.vmem [shape: f32[4,32], index: 5, kind: input, shape index: {}]
  %s6 = inlined_call_operand.vmem [shape: f32[4,1], index: 6, kind: input, shape index: {}]
  %s7 = inlined_call_operand.vmem [shape: f32[4,1], index: 7, kind: input, shape index: {}]
  %s8 = inlined_call_operand.vmem [shape: f32[4,1], index: 8, kind: input, shape index: {}]
  %s9 = inlined_call_operand.vmem [shape: f32[4,1], index: 9, kind: input, shape index: {}]
  %s10 = inlined_call_operand.hbm [shape: f32[2,4,256], index: 10, kind: output, shape index: {0}]
  %s11 = inlined_call_operand.hbm [shape: f32[1,1,2], index: 11, kind: output, shape index: {1}]
  %12 = xla_tuple %s10, %s11
  %s13 = sld [smem:[#allocation0]]
  $region58: #{tpu_custom_call.1} parent=0
    _
  %s15 = ssub.s32 1, %s13
  %s16 = scalar_select 0, %s15, %s13
  $region1: #{tpu_custom_call.1} parent=0
    #allocation2 [shape = 'u8[8192]{0}', space=vmem, size = 0x2000, scoped, tag = 'output window, operand 0, single buffered']
    #allocation3 [shape = 's32[1]{0}', space=sflag, size = 0x4, scoped, tag = 'scoped memory for tpu_custom_call.1']
    #allocation4 [shape = 'u8[512]{0}', space=vmem, size = 0x400, scoped, tag = 'output window, operand 1, single buffered']
    #allocation5 [shape = 's32[1]{0}', space=sflag, size = 0x4, scoped, tag = 'scoped memory for tpu_custom_call.1']
    %17 = vsyncpa [#allocation3], 0
    %18 = vsyncpa [#allocation5], 0
    // Predicated region
    $region2: #{tpu_custom_call.1} parent=1 // pred_check
      _
    $region3: #{tpu_custom_call.1} parent=1 // pred_check_branch
      %20 = sbr.rel (0) target = $region5
    $region4: #{tpu_custom_call.1} parent=1 // pred_region
      _
    $region5: #{tpu_custom_call.1} parent=1 // pred_fallthru
      _
    // Predicated region
    $region6: #{tpu_custom_call.1} parent=1 // pred_check
      _
    $region7: #{tpu_custom_call.1} parent=1 // pred_check_branch
      %22 = sbr.rel (0) target = $region9
    $region8: #{tpu_custom_call.1} parent=1 // pred_region
      _
    $region9: #{tpu_custom_call.1} parent=1 // pred_fallthru
      _
    // Predicated region
    $region10: #{tpu_custom_call.1} parent=1 // pred_check
      _
    $region11: #{tpu_custom_call.1} parent=1 // pred_check_branch
      %24 = sbr.rel (0) target = $region13
    $region12: #{tpu_custom_call.1} parent=1 // pred_region
      _
    $region13: #{tpu_custom_call.1} parent=1 // pred_fallthru
      _
    // Predicated region
    $region14: #{tpu_custom_call.1} parent=1 // pred_check
      _
    $region15: #{tpu_custom_call.1} parent=1 // pred_check_branch
      %26 = sbr.rel (0) target = $region17
    $region16: #{tpu_custom_call.1} parent=1 // pred_region
      _
    $region17: #{tpu_custom_call.1} parent=1 // pred_fallthru
      _
    // Predicated region
    $region18: #{tpu_custom_call.1} parent=1 // pred_check
      _
    $region19: #{tpu_custom_call.1} parent=1 // pred_check_branch
      %28 = sbr.rel (0) target = $region21
    $region20: #{tpu_custom_call.1} parent=1 // pred_region
      _
    $region21: #{tpu_custom_call.1} parent=1 // pred_fallthru
      _
    // Predicated region
    $region22: #{tpu_custom_call.1} parent=1 // pred_check
      _
    $region23: #{tpu_custom_call.1} parent=1 // pred_check_branch
      %30 = sbr.rel (0) target = $region25
    $region24: #{tpu_custom_call.1} parent=1 // pred_region
      _
    $region25: #{tpu_custom_call.1} parent=1 // pred_fallthru
      _
    // Predicated region
    $region26: #{tpu_custom_call.1} parent=1 // pred_check
      _
    $region27: #{tpu_custom_call.1} parent=1 // pred_check_branch
      %32 = sbr.rel (0) target = $region29
    $region28: #{tpu_custom_call.1} parent=1 // pred_region
      _
    $region29: #{tpu_custom_call.1} parent=1 // pred_fallthru
      _
    // Predicated region
    $region30: #{tpu_custom_call.1} parent=1 // pred_check
      _
    $region31: #{tpu_custom_call.1} parent=1 // pred_check_branch
      %34 = sbr.rel (0) target = $region33
    $region32: #{tpu_custom_call.1} parent=1 // pred_region
      _
    $region33: #{tpu_custom_call.1} parent=1 // pred_fallthru
      _
    // Predicated region
    $region34: #{tpu_custom_call.1} parent=1 // pred_check
      _
    $region35: #{tpu_custom_call.1} parent=1 // pred_check_branch
      %36 = sbr.rel (0) target = $region37
    $region36: #{tpu_custom_call.1} parent=1 // pred_region
      _
    $region37: #{tpu_custom_call.1} parent=1 // pred_fallthru
      _
    // Predicated region
    $region38: #{tpu_custom_call.1} parent=1 // pred_check
      _
    $region39: #{tpu_custom_call.1} parent=1 // pred_check_branch
      %38 = sbr.rel (0) target = $region41
    $region40: #{tpu_custom_call.1} parent=1 // pred_region
      _
    $region41: #{tpu_custom_call.1} parent=1 // pred_fallthru
      _
    %v39 = vld [vmem:[%s1] sm:$0xff]
    %v40 = vsub.f32 1.0, %v39
    %v41 = vld [vmem:[%s2] sm:$0xff]
    %v42 = vld [vmem:[%s2 + $0x8] sm:$0xff]
    %v43 = vld [vmem:[%s2 + $0x10] sm:$0xff]
    %v44 = vld [vmem:[%s2 + $0x18] sm:$0xff]
    %v45 = vld [vmem:[%s3] sm:$0xff]
    %v46 = vld [vmem:[%s3 + $0x8] sm:$0xff]
    %v47 = vld [vmem:[%s3 + $0x10] sm:$0xff]
    %v48 = vld [vmem:[%s3 + $0x18] sm:$0xff]
    %v49 = vld [vmem:[%s4] sm:$0xf]
    %v50 = vld [vmem:[%s5] sm:$0xf]
    %v51 = vld [vmem:[%s6] sm:$0xf]
    %v52 = vld [vmem:[%s7] sm:$0xf]
    %v53 = vld [vmem:[%s8] sm:$0xf]
    %v54 = vld [vmem:[%s9] sm:$0xf]
    %v55 = vld [vmem:[%s0] sm:$0xff]
    %v56 = vmul.f32 %v55, %v39
    %58 = vset.pattern.permute.xlu0 0
    %59 = vperm.xlu0 %58, %v45
    %v60 = vpop.permute.xlu0 %59
    %63 = vset.pattern.permute.xlu0 0
    %64 = vperm.xlu0 %63, %v46
    %v65 = vpop.permute.xlu0 %64
    %68 = vset.pattern.permute.xlu0 0
    %69 = vperm.xlu0 %68, %v47
    %v70 = vpop.permute.xlu0 %69
    %73 = vset.pattern.permute.xlu0 0
    %74 = vperm.xlu0 %73, %v48
    %v75 = vpop.permute.xlu0 %74
    %v78 = vcombine.high %v56, %v56
    %vm79 = vcmask 31744
    %v81 = vsel %vm79, %v41, 0
    %v84 = vsel %vm79, %v42, 0
    %v87 = vsel %vm79, %v43, 0
    %v90 = vsel %vm79, %v44, 0
    %vm92 = vcmask 1043456
    %v93 = vsel %vm92, %v56, 0
    %v95 = vsel %vm92, %v78, 0
    %97 = vmatprep.subr.mxu0 %v95
    %98 = vmatpush1.msra.mxu0 %v93
    %99 = vmatprep.subr.mxu0 0.0
    %100 = vmatpush1.msra.mxu0 0.0
    %101 = vmatprep.subr.mxu0 0.0
    %102 = vmatpush1.msra.mxu0 0.0
    %103 = vmatprep.subr.mxu0 0.0
    %104 = vmatpush1.msra.mxu0 0.0
    %105 = vmatprep.subr.mxu0 0.0
    %106 = vmatpush1.msra.mxu0 0.0
    %107 = vmatprep.subr.mxu0 0.0
    %108 = vmatpush1.msra.mxu0 0.0
    %109 = vmatprep.subr.mxu0 0.0
    %110 = vmatpush1.msra.mxu0 0.0
    %111 = vmatprep.subr.mxu0 0.0
    %112 = vmatpush1.msra.mxu0 0.0
    %113 = vmatprep.subr.mxu0 0.0
    %114 = vmatpush1.msra.mxu0 0.0
    %115 = vmatprep.subr.mxu0 0.0
    %116 = vmatpush1.msra.mxu0 0.0
    %117 = vmatprep.subr.mxu0 0.0
    %118 = vmatpush1.msra.mxu0 0.0
    %119 = vmatprep.subr.mxu0 0.0
    %120 = vmatpush1.msra.mxu0 0.0
    %121 = vmatprep.subr.mxu0 0.0
    %122 = vmatpush1.msra.mxu0 0.0
    %123 = vmatprep.subr.mxu0 0.0
    %124 = vmatpush1.msra.mxu0 0.0
    %125 = vmatprep.subr.mxu0 0.0
    %126 = vmatpush1.msra.mxu0 0.0
    %127 = vmatprep.subr.mxu0 0.0
    %128 = vmatpush1.msra.mxu0 0.0
    %129 = vmatprep.subr.mxu0 0.0
    %130 = vmatpush1.msra.mxu0 0.0
    %131 = vmatprep.subr.mxu0 0.0
    %132 = vmatpush1.msra.mxu0 0.0
    %133 = vmatprep.subr.mxu0 0.0
    %134 = vmatpush1.msra.mxu0 0.0
    %135 = vmatprep.subr.mxu0 0.0
    %136 = vmatpush1.msra.mxu0 0.0
    %137 = vmatprep.subr.mxu0 0.0
    %138 = vmatpush1.msra.mxu0 0.0
    %139 = vmatprep.subr.mxu0 0.0
    %140 = vmatpush1.msra.mxu0 0.0
    %141 = vmatprep.subr.mxu0 0.0
    %142 = vmatpush1.msra.mxu0 0.0
    %143 = vmatprep.subr.mxu0 0.0
    %144 = vmatpush1.msra.mxu0 0.0
    %145 = vmatprep.subr.mxu0 0.0
    %146 = vmatpush1.msra.mxu0 0.0
    %147 = vmatprep.subr.mxu0 0.0
    %148 = vmatpush1.msra.mxu0 0.0
    %149 = vmatprep.subr.mxu0 0.0
    %150 = vmatpush1.msra.mxu0 0.0
    %151 = vmatprep.subr.mxu0 0.0
    %152 = vmatpush1.msra.mxu0 0.0
    %153 = vmatprep.subr.mxu0 0.0
    %154 = vmatpush1.msra.mxu0 0.0
    %155 = vmatprep.subr.mxu0 0.0
    %156 = vmatpush1.msra.mxu0 0.0
    %157 = vmatprep.subr.mxu0 0.0
    %158 = vmatpush1.msra.mxu0 0.0
    %159 = vmatprep.subr.mxu0 0.0
    %160 = vmatpush1.msra.mxu0 0.0
    %161 = vmatprep.mubr.f32.mxu0 0.0
    %162 = vmatmul.mubr.f32.gmra.mrb[0].mxu0 %v81
    %v163 = vpop.f32.mrb[0].mxu0
    %v164 = vadd.f32 %v60, %v163
    %v165 = vpop.f32.mrb[0].mxu0
    %v166 = vadd.f32 %v60, %v165
    %167 = vmatprep.mubr.f32.mxu0 0.0
    %168 = vmatmul.mubr.f32.gmra.mrb[0].mxu0 %v84
    %v169 = vpop.f32.mrb[0].mxu0
    %v170 = vadd.f32 %v65, %v169
    %v171 = vpop.f32.mrb[0].mxu0
    %v172 = vadd.f32 %v65, %v171
    %173 = vmatprep.mubr.f32.mxu0 0.0
    %174 = vmatmul.mubr.f32.gmra.mrb[0].mxu0 %v87
    %v175 = vpop.f32.mrb[0].mxu0
    %v176 = vadd.f32 %v70, %v175
    %v177 = vpop.f32.mrb[0].mxu0
    %v178 = vadd.f32 %v70, %v177
    %179 = vmatprep.mubr.f32.mxu0 0.0
    %180 = vmatmul.mubr.f32.gmra.mrb[0].mxu0 %v90
    %v181 = vpop.f32.mrb[0].mxu0
    %v182 = vadd.f32 %v75, %v181
    %v183 = vpop.f32.mrb[0].mxu0
    %v184 = vadd.f32 %v75, %v183
    %185 = vdwg.mxu0
    %v186 = vmax.f32 %v164, 0.0
    %v187 = vmax.f32 %v166, 0.0
    %v188 = vmax.f32 %v170, 0.0
    %v189 = vmax.f32 %v172, 0.0
    %v190 = vmax.f32 %v176, 0.0
    %v191 = vmax.f32 %v178, 0.0
    %v192 = vmax.f32 %v182, 0.0
    %v193 = vmax.f32 %v184, 0.0
    %195 = vset.pattern.permute.xlu0 0
    %196 = vperm.xlu0 %195, %v51
    %v197 = vpop.permute.xlu0 %196
    %vm199 = vcmask 261120
    %v201 = vsel %vm199, %v49, 0
    %203 = vmatprep.subr.mxu0 %v187
    %204 = vmatpush1.msra.mxu0 %v186
    %205 = vmatprep.subr.mxu0 %v189
    %206 = vmatpush1.msra.mxu0 %v188
    %207 = vmatprep.subr.mxu0 %v191
    %208 = vmatpush1.msra.mxu0 %v190
    %209 = vmatprep.subr.mxu0 %v193
    %210 = vmatpush1.msra.mxu0 %v192
    %211 = vmatprep.subr.mxu0 0.0
    %212 = vmatpush1.msra.mxu0 0.0
    %213 = vmatprep.subr.mxu0 0.0
    %214 = vmatpush1.msra.mxu0 0.0
    %215 = vmatprep.subr.mxu0 0.0
    %216 = vmatpush1.msra.mxu0 0.0
    %217 = vmatprep.subr.mxu0 0.0
    %218 = vmatpush1.msra.mxu0 0.0
    %219 = vmatprep.subr.mxu0 0.0
    %220 = vmatpush1.msra.mxu0 0.0
    %221 = vmatprep.subr.mxu0 0.0
    %222 = vmatpush1.msra.mxu0 0.0
    %223 = vmatprep.subr.mxu0 0.0
    %224 = vmatpush1.msra.mxu0 0.0
    %225 = vmatprep.subr.mxu0 0.0
    %226 = vmatpush1.msra.mxu0 0.0
    %227 = vmatprep.subr.mxu0 0.0
    %228 = vmatpush1.msra.mxu0 0.0
    %229 = vmatprep.subr.mxu0 0.0
    %230 = vmatpush1.msra.mxu0 0.0
    %231 = vmatprep.subr.mxu0 0.0
    %232 = vmatpush1.msra.mxu0 0.0
    %233 = vmatprep.subr.mxu0 0.0
    %234 = vmatpush1.msra.mxu0 0.0
    %235 = vmatprep.subr.mxu0 0.0
    %236 = vmatpush1.msra.mxu0 0.0
    %237 = vmatprep.subr.mxu0 0.0
    %238 = vmatpush1.msra.mxu0 0.0
    %239 = vmatprep.subr.mxu0 0.0
    %240 = vmatpush1.msra.mxu0 0.0
    %241 = vmatprep.subr.mxu0 0.0
    %242 = vmatpush1.msra.mxu0 0.0
    %243 = vmatprep.subr.mxu0 0.0
    %244 = vmatpush1.msra.mxu0 0.0
    %245 = vmatprep.subr.mxu0 0.0
    %246 = vmatpush1.msra.mxu0 0.0
    %247 = vmatprep.subr.mxu0 0.0
    %248 = vmatpush1.msra.mxu0 0.0
    %249 = vmatprep.subr.mxu0 0.0
    %250 = vmatpush1.msra.mxu0 0.0
    %251 = vmatprep.subr.mxu0 0.0
    %252 = vmatpush1.msra.mxu0 0.0
    %253 = vmatprep.subr.mxu0 0.0
    %254 = vmatpush1.msra.mxu0 0.0
    %255 = vmatprep.subr.mxu0 0.0
    %256 = vmatpush1.msra.mxu0 0.0
    %257 = vmatprep.subr.mxu0 0.0
    %258 = vmatpush1.msra.mxu0 0.0
    %259 = vmatprep.subr.mxu0 0.0
    %260 = vmatpush1.msra.mxu0 0.0
    %261 = vmatprep.subr.mxu0 0.0
    %262 = vmatpush1.msra.mxu0 0.0
    %263 = vmatprep.subr.mxu0 0.0
    %264 = vmatpush1.msra.mxu0 0.0
    %265 = vmatprep.subr.mxu0 0.0
    %266 = vmatpush1.msra.mxu0 0.0
    %267 = vmatprep.mubr.f32.mxu0 0.0
    %268 = vmatmul.mubr.f32.gmra.mrb[0].mxu0 %v201
    %v269 = vpop.f32.mrb[0].mxu0
    %v270 = vadd.f32 %v197, %v269
    %v271 = vpop.f32.mrb[0].mxu0
    %v272 = vadd.f32 %v197, %v271
    %273 = vdwg.mxu0
    %275 = vset.pattern.permute.xlu0 0
    %276 = vperm.xlu0 %275, %v52
    %v277 = vpop.permute.xlu0 %276
    %v280 = vsel %vm199, %v50, 0
    %282 = vmatprep.subr.mxu0 %v187
    %283 = vmatpush1.msra.mxu0 %v186
    %284 = vmatprep.subr.mxu0 %v189
    %285 = vmatpush1.msra.mxu0 %v188
    %286 = vmatprep.subr.mxu0 %v191
    %287 = vmatpush1.msra.mxu0 %v190
    %288 = vmatprep.subr.mxu0 %v193
    %289 = vmatpush1.msra.mxu0 %v192
    %290 = vmatprep.subr.mxu0 0.0
    %291 = vmatpush1.msra.mxu0 0.0
    %292 = vmatprep.subr.mxu0 0.0
    %293 = vmatpush1.msra.mxu0 0.0
    %294 = vmatprep.subr.mxu0 0.0
    %295 = vmatpush1.msra.mxu0 0.0
    %296 = vmatprep.subr.mxu0 0.0
    %297 = vmatpush1.msra.mxu0 0.0
    %298 = vmatprep.subr.mxu0 0.0
    %299 = vmatpush1.msra.mxu0 0.0
    %300 = vmatprep.subr.mxu0 0.0
    %301 = vmatpush1.msra.mxu0 0.0
    %302 = vmatprep.subr.mxu0 0.0
    %303 = vmatpush1.msra.mxu0 0.0
    %304 = vmatprep.subr.mxu0 0.0
    %305 = vmatpush1.msra.mxu0 0.0
    %306 = vmatprep.subr.mxu0 0.0
    %307 = vmatpush1.msra.mxu0 0.0
    %308 = vmatprep.subr.mxu0 0.0
    %309 = vmatpush1.msra.mxu0 0.0
    %310 = vmatprep.subr.mxu0 0.0
    %311 = vmatpush1.msra.mxu0 0.0
    %312 = vmatprep.subr.mxu0 0.0
    %313 = vmatpush1.msra.mxu0 0.0
    %314 = vmatprep.subr.mxu0 0.0
    %315 = vmatpush1.msra.mxu0 0.0
    %316 = vmatprep.subr.mxu0 0.0
    %317 = vmatpush1.msra.mxu0 0.0
    %318 = vmatprep.subr.mxu0 0.0
    %319 = vmatpush1.msra.mxu0 0.0
    %320 = vmatprep.subr.mxu0 0.0
    %321 = vmatpush1.msra.mxu0 0.0
    %322 = vmatprep.subr.mxu0 0.0
    %323 = vmatpush1.msra.mxu0 0.0
    %324 = vmatprep.subr.mxu0 0.0
    %325 = vmatpush1.msra.mxu0 0.0
    %326 = vmatprep.subr.mxu0 0.0
    %327 = vmatpush1.msra.mxu0 0.0
    %328 = vmatprep.subr.mxu0 0.0
    %329 = vmatpush1.msra.mxu0 0.0
    %330 = vmatprep.subr.mxu0 0.0
    %331 = vmatpush1.msra.mxu0 0.0
    %332 = vmatprep.subr.mxu0 0.0
    %333 = vmatpush1.msra.mxu0 0.0
    %334 = vmatprep.subr.mxu0 0.0
    %335 = vmatpush1.msra.mxu0 0.0
    %336 = vmatprep.subr.mxu0 0.0
    %337 = vmatpush1.msra.mxu0 0.0
    %338 = vmatprep.subr.mxu0 0.0
    %339 = vmatpush1.msra.mxu0 0.0
    %340 = vmatprep.subr.mxu0 0.0
    %341 = vmatpush1.msra.mxu0 0.0
    %342 = vmatprep.subr.mxu0 0.0
    %343 = vmatpush1.msra.mxu0 0.0
    %344 = vmatprep.subr.mxu0 0.0
    %345 = vmatpush1.msra.mxu0 0.0
    %346 = vmatprep.mubr.f32.mxu0 0.0
    %347 = vmatmul.mubr.f32.gmra.mrb[0].mxu0 %v280
    %v348 = vpop.f32.mrb[0].mxu0
    %v349 = vadd.f32 %v277, %v348
    %v350 = vpop.f32.mrb[0].mxu0
    %v351 = vadd.f32 %v277, %v350
    %352 = vdwg.mxu0
    %354 = vset.pattern.permute.xlu0 0
    %355 = vperm.xlu0 %354, %v54
    %v356 = vpop.permute.xlu0 %355
    %v358 = vmul.f32 %v270, %v356
    %v359 = vmul.f32 %v272, %v356
    %v360 = vtanh.pop %v358
    %v361 = vtanh.pop %v359
    %363 = vset.pattern.permute.xlu0 0
    %364 = vperm.xlu0 %363, %v53
    %v365 = vpop.permute.xlu0 %364
    %v367 = vmul.f32 %v360, %v365
    %v368 = vmul.f32 %v361, %v365
    %v370 = vcombine.high %v40, %v40
    %v372 = vmul.f32 %v367, %v40
    %v373 = vmul.f32 %v368, %v370
    %v374 = vmul.f32 %v349, %v40
    %v375 = vmul.f32 %v351, %v370
    %v378 = vcombine.low %v374, %v375
    %v380 = vadd.f32 %v55, %v378
    %v381 = vmul.f32 %v372, 1.442695
    %v382 = vpow.pop %v381
    %v383 = vmul.f32 %v373, 1.442695
    %v384 = vpow.pop %v383
    %v387 = vcombine.low %v382, %v384
    %v389 = vmul.f32 %v380, %v387
    %390 = vst [vmem:[#allocation2] sm:$0xff] %v389
    %v391 = vsel %vm92, %v372, 0.0
    %v392 = vsel %vm92, %v373, 0.0
    %v393 = vadd.f32 %v391, %v392
    %394 = vadd.xlane.f32.xlu0 %v393
    %v395 = vpop.xlane.xlu0 %394
    %v396 = vrot.slane %v395, 4
    %v397 = vadd.f32 %v395, %v396
    %v398 = vrot.slane %v397, 2
    %v399 = vadd.f32 %v397, %v398
    %v400 = vrot.slane %v399, 1
    %v401 = vadd.f32 %v399, %v400
    %s402 = vtos %v401
    %v403 = vstv %s402
    %s404 = scalar_lea.vmem %s0, 8
    %v405 = vld [vmem:[%s404] sm:$0xff]
    %v406 = vmul.f32 %v405, %v39
    %v408 = vcombine.high %v406, %v406
    %v409 = vsel %vm92, %v406, 0
    %v411 = vsel %vm92, %v408, 0
    %413 = vmatprep.subr.mxu0 %v411
    %414 = vmatpush1.msra.mxu0 %v409
    %415 = vmatprep.subr.mxu0 0.0
    %416 = vmatpush1.msra.mxu0 0.0
    %417 = vmatprep.subr.mxu0 0.0
    %418 = vmatpush1.msra.mxu0 0.0
    %419 = vmatprep.subr.mxu0 0.0
    %420 = vmatpush1.msra.mxu0 0.0
    %421 = vmatprep.subr.mxu0 0.0
    %422 = vmatpush1.msra.mxu0 0.0
    %423 = vmatprep.subr.mxu0 0.0
    %424 = vmatpush1.msra.mxu0 0.0
    %425 = vmatprep.subr.mxu0 0.0
    %426 = vmatpush1.msra.mxu0 0.0
    %427 = vmatprep.subr.mxu0 0.0
    %428 = vmatpush1.msra.mxu0 0.0
    %429 = vmatprep.subr.mxu0 0.0
    %430 = vmatpush1.msra.mxu0 0.0
    %431 = vmatprep.subr.mxu0 0.0
    %432 = vmatpush1.msra.mxu0 0.0
    %433 = vmatprep.subr.mxu0 0.0
    %434 = vmatpush1.msra.mxu0 0.0
    %435 = vmatprep.subr.mxu0 0.0
    %436 = vmatpush1.msra.mxu0 0.0
    %437 = vmatprep.subr.mxu0 0.0
    %438 = vmatpush1.msra.mxu0 0.0
    %439 = vmatprep.subr.mxu0 0.0
    %440 = vmatpush1.msra.mxu0 0.0
    %441 = vmatprep.subr.mxu0 0.0
    %442 = vmatpush1.msra.mxu0 0.0
    %443 = vmatprep.subr.mxu0 0.0
    %444 = vmatpush1.msra.mxu0 0.0
    %445 = vmatprep.subr.mxu0 0.0
    %446 = vmatpush1.msra.mxu0 0.0
    %447 = vmatprep.subr.mxu0 0.0
    %448 = vmatpush1.msra.mxu0 0.0
    %449 = vmatprep.subr.mxu0 0.0
    %450 = vmatpush1.msra.mxu0 0.0
    %451 = vmatprep.subr.mxu0 0.0
    %452 = vmatpush1.msra.mxu0 0.0
    %453 = vmatprep.subr.mxu0 0.0
    %454 = vmatpush1.msra.mxu0 0.0
    %455 = vmatprep.subr.mxu0 0.0
    %456 = vmatpush1.msra.mxu0 0.0
    %457 = vmatprep.subr.mxu0 0.0
    %458 = vmatpush1.msra.mxu0 0.0
    %459 = vmatprep.subr.mxu0 0.0
    %460 = vmatpush1.msra.mxu0 0.0
    %461 = vmatprep.subr.mxu0 0.0
    %462 = vmatpush1.msra.mxu0 0.0
    %463 = vmatprep.subr.mxu0 0.0
    %464 = vmatpush1.msra.mxu0 0.0
    %465 = vmatprep.subr.mxu0 0.0
    %466 = vmatpush1.msra.mxu0 0.0
    %467 = vmatprep.subr.mxu0 0.0
    %468 = vmatpush1.msra.mxu0 0.0
    %469 = vmatprep.subr.mxu0 0.0
    %470 = vmatpush1.msra.mxu0 0.0
    %471 = vmatprep.subr.mxu0 0.0
    %472 = vmatpush1.msra.mxu0 0.0
    %473 = vmatprep.subr.mxu0 0.0
    %474 = vmatpush1.msra.mxu0 0.0
    %475 = vmatprep.subr.mxu0 0.0
    %476 = vmatpush1.msra.mxu0 0.0
    %477 = vmatprep.mubr.f32.mxu0 0.0
    %478 = vmatmul.mubr.f32.gmra.mrb[0].mxu0 %v81
    %v479 = vpop.f32.mrb[0].mxu0
    %v480 = vadd.f32 %v60, %v479
    %v481 = vpop.f32.mrb[0].mxu0
    %v482 = vadd.f32 %v60, %v481
    %483 = vmatprep.mubr.f32.mxu0 0.0
    %484 = vmatmul.mubr.f32.gmra.mrb[0].mxu0 %v84
    %v485 = vpop.f32.mrb[0].mxu0
    %v486 = vadd.f32 %v65, %v485
    %v487 = vpop.f32.mrb[0].mxu0
    %v488 = vadd.f32 %v65, %v487
    %489 = vmatprep.mubr.f32.mxu0 0.0
    %490 = vmatmul.mubr.f32.gmra.mrb[0].mxu0 %v87
    %v491 = vpop.f32.mrb[0].mxu0
    %v492 = vadd.f32 %v70, %v491
    %v493 = vpop.f32.mrb[0].mxu0
    %v494 = vadd.f32 %v70, %v493
    %495 = vmatprep.mubr.f32.mxu0 0.0
    %496 = vmatmul.mubr.f32.gmra.mrb[0].mxu0 %v90
    %v497 = vpop.f32.mrb[0].mxu0
    %v498 = vadd.f32 %v75, %v497
    %v499 = vpop.f32.mrb[0].mxu0
    %v500 = vadd.f32 %v75, %v499
    %501 = vdwg.mxu0
    %v502 = vmax.f32 %v480, 0.0
    %v503 = vmax.f32 %v482, 0.0
    %v504 = vmax.f32 %v486, 0.0
    %v505 = vmax.f32 %v488, 0.0
    %v506 = vmax.f32 %v492, 0.0
    %v507 = vmax.f32 %v494, 0.0
    %v508 = vmax.f32 %v498, 0.0
    %v509 = vmax.f32 %v500, 0.0
    %510 = vmatprep.subr.mxu0 %v503
    %511 = vmatpush1.msra.mxu0 %v502
    %512 = vmatprep.subr.mxu0 %v505
    %513 = vmatpush1.msra.mxu0 %v504
    %514 = vmatprep.subr.mxu0 %v507
    %515 = vmatpush1.msra.mxu0 %v506
    %516 = vmatprep.subr.mxu0 %v509
    %517 = vmatpush1.msra.mxu0 %v508
    %518 = vmatprep.subr.mxu0 0.0
    %519 = vmatpush1.msra.mxu0 0.0
    %520 = vmatprep.subr.mxu0 0.0
    %521 = vmatpush1.msra.mxu0 0.0
    %522 = vmatprep.subr.mxu0 0.0
    %523 = vmatpush1.msra.mxu0 0.0
    %524 = vmatprep.subr.mxu0 0.0
    %525 = vmatpush1.msra.mxu0 0.0
    %526 = vmatprep.subr.mxu0 0.0
    %527 = vmatpush1.msra.mxu0 0.0
    %528 = vmatprep.subr.mxu0 0.0
    %529 = vmatpush1.msra.mxu0 0.0
    %530 = vmatprep.subr.mxu0 0.0
    %531 = vmatpush1.msra.mxu0 0.0
    %532 = vmatprep.subr.mxu0 0.0
    %533 = vmatpush1.msra.mxu0 0.0
    %534 = vmatprep.subr.mxu0 0.0
    %535 = vmatpush1.msra.mxu0 0.0
    %536 = vmatprep.subr.mxu0 0.0
    %537 = vmatpush1.msra.mxu0 0.0
    %538 = vmatprep.subr.mxu0 0.0
    %539 = vmatpush1.msra.mxu0 0.0
    %540 = vmatprep.subr.mxu0 0.0
    %541 = vmatpush1.msra.mxu0 0.0
    %542 = vmatprep.subr.mxu0 0.0
    %543 = vmatpush1.msra.mxu0 0.0
    %544 = vmatprep.subr.mxu0 0.0
    %545 = vmatpush1.msra.mxu0 0.0
    %546 = vmatprep.subr.mxu0 0.0
    %547 = vmatpush1.msra.mxu0 0.0
    %548 = vmatprep.subr.mxu0 0.0
    %549 = vmatpush1.msra.mxu0 0.0
    %550 = vmatprep.subr.mxu0 0.0
    %551 = vmatpush1.msra.mxu0 0.0
    %552 = vmatprep.subr.mxu0 0.0
    %553 = vmatpush1.msra.mxu0 0.0
    %554 = vmatprep.subr.mxu0 0.0
    %555 = vmatpush1.msra.mxu0 0.0
    %556 = vmatprep.subr.mxu0 0.0
    %557 = vmatpush1.msra.mxu0 0.0
    %558 = vmatprep.subr.mxu0 0.0
    %559 = vmatpush1.msra.mxu0 0.0
    %560 = vmatprep.subr.mxu0 0.0
    %561 = vmatpush1.msra.mxu0 0.0
    %562 = vmatprep.subr.mxu0 0.0
    %563 = vmatpush1.msra.mxu0 0.0
    %564 = vmatprep.subr.mxu0 0.0
    %565 = vmatpush1.msra.mxu0 0.0
    %566 = vmatprep.subr.mxu0 0.0
    %567 = vmatpush1.msra.mxu0 0.0
    %568 = vmatprep.subr.mxu0 0.0
    %569 = vmatpush1.msra.mxu0 0.0
    %570 = vmatprep.subr.mxu0 0.0
    %571 = vmatpush1.msra.mxu0 0.0
    %572 = vmatprep.subr.mxu0 0.0
    %573 = vmatpush1.msra.mxu0 0.0
    %574 = vmatprep.mubr.f32.mxu0 0.0
    %575 = vmatmul.mubr.f32.gmra.mrb[0].mxu0 %v201
    %v576 = vpop.f32.mrb[0].mxu0
    %v577 = vadd.f32 %v197, %v576
    %v578 = vpop.f32.mrb[0].mxu0
    %v579 = vadd.f32 %v197, %v578
    %580 = vdwg.mxu0
    %581 = vmatprep.subr.mxu0 %v503
    %582 = vmatpush1.msra.mxu0 %v502
    %583 = vmatprep.subr.mxu0 %v505
    %584 = vmatpush1.msra.mxu0 %v504
    %585 = vmatprep.subr.mxu0 %v507
    %586 = vmatpush1.msra.mxu0 %v506
    %587 = vmatprep.subr.mxu0 %v509
    %588 = vmatpush1.msra.mxu0 %v508
    %589 = vmatprep.subr.mxu0 0.0
    %590 = vmatpush1.msra.mxu0 0.0
    %591 = vmatprep.subr.mxu0 0.0
    %592 = vmatpush1.msra.mxu0 0.0
    %593 = vmatprep.subr.mxu0 0.0
    %594 = vmatpush1.msra.mxu0 0.0
    %595 = vmatprep.subr.mxu0 0.0
    %596 = vmatpush1.msra.mxu0 0.0
    %597 = vmatprep.subr.mxu0 0.0
    %598 = vmatpush1.msra.mxu0 0.0
    %599 = vmatprep.subr.mxu0 0.0
    %600 = vmatpush1.msra.mxu0 0.0
    %601 = vmatprep.subr.mxu0 0.0
    %602 = vmatpush1.msra.mxu0 0.0
    %603 = vmatprep.subr.mxu0 0.0
    %604 = vmatpush1.msra.mxu0 0.0
    %605 = vmatprep.subr.mxu0 0.0
    %606 = vmatpush1.msra.mxu0 0.0
    %607 = vmatprep.subr.mxu0 0.0
    %608 = vmatpush1.msra.mxu0 0.0
    %609 = vmatprep.subr.mxu0 0.0
    %610 = vmatpush1.msra.mxu0 0.0
    %611 = vmatprep.subr.mxu0 0.0
    %612 = vmatpush1.msra.mxu0 0.0
    %613 = vmatprep.subr.mxu0 0.0
    %614 = vmatpush1.msra.mxu0 0.0
    %615 = vmatprep.subr.mxu0 0.0
    %616 = vmatpush1.msra.mxu0 0.0
    %617 = vmatprep.subr.mxu0 0.0
    %618 = vmatpush1.msra.mxu0 0.0
    %619 = vmatprep.subr.mxu0 0.0
    %620 = vmatpush1.msra.mxu0 0.0
    %621 = vmatprep.subr.mxu0 0.0
    %622 = vmatpush1.msra.mxu0 0.0
    %623 = vmatprep.subr.mxu0 0.0
    %624 = vmatpush1.msra.mxu0 0.0
    %625 = vmatprep.subr.mxu0 0.0
    %626 = vmatpush1.msra.mxu0 0.0
    %627 = vmatprep.subr.mxu0 0.0
    %628 = vmatpush1.msra.mxu0 0.0
    %629 = vmatprep.subr.mxu0 0.0
    %630 = vmatpush1.msra.mxu0 0.0
    %631 = vmatprep.subr.mxu0 0.0
    %632 = vmatpush1.msra.mxu0 0.0
    %633 = vmatprep.subr.mxu0 0.0
    %634 = vmatpush1.msra.mxu0 0.0
    %635 = vmatprep.subr.mxu0 0.0
    %636 = vmatpush1.msra.mxu0 0.0
    %637 = vmatprep.subr.mxu0 0.0
    %638 = vmatpush1.msra.mxu0 0.0
    %639 = vmatprep.subr.mxu0 0.0
    %640 = vmatpush1.msra.mxu0 0.0
    %641 = vmatprep.subr.mxu0 0.0
    %642 = vmatpush1.msra.mxu0 0.0
    %643 = vmatprep.subr.mxu0 0.0
    %644 = vmatpush1.msra.mxu0 0.0
    %645 = vmatprep.mubr.f32.mxu0 0.0
    %646 = vmatmul.mubr.f32.gmra.mrb[0].mxu0 %v280
    %v647 = vpop.f32.mrb[0].mxu0
    %v648 = vadd.f32 %v277, %v647
    %v649 = vpop.f32.mrb[0].mxu0
    %v650 = vadd.f32 %v277, %v649
    %651 = vdwg.mxu0
    %v652 = vmul.f32 %v577, %v356
    %v653 = vmul.f32 %v579, %v356
    %v654 = vtanh.pop %v652
    %v655 = vtanh.pop %v653
    %v656 = vmul.f32 %v654, %v365
    %v657 = vmul.f32 %v655, %v365
    %v658 = vmul.f32 %v656, %v40
    %v659 = vmul.f32 %v657, %v370
    %v660 = vmul.f32 %v648, %v40
    %v661 = vmul.f32 %v650, %v370
    %v664 = vcombine.low %v660, %v661
    %v666 = vadd.f32 %v405, %v664
    %v667 = vmul.f32 %v658, 1.442695
    %v668 = vpow.pop %v667
    %v669 = vmul.f32 %v659, 1.442695
    %v670 = vpow.pop %v669
    %v673 = vcombine.low %v668, %v670
    %v675 = vmul.f32 %v666, %v673
    %s676 = scalar_lea.vmem [#allocation2], 8
    %677 = vst [vmem:[%s676] sm:$0xff] %v675
    %v678 = vsel %vm92, %v658, 0.0
    %v679 = vsel %vm92, %v659, 0.0
    %v680 = vadd.f32 %v678, %v679
    %681 = vadd.xlane.f32.xlu0 %v680
    %v682 = vpop.xlane.xlu0 %681
    %v683 = vrot.slane %v682, 4
    %v684 = vadd.f32 %v682, %v683
    %v685 = vrot.slane %v684, 2
    %v686 = vadd.f32 %v684, %v685
    %v687 = vrot.slane %v686, 1
    %v688 = vadd.f32 %v686, %v687
    %s689 = vtos %v688
    %v690 = vstv %s689
    %vm691 = vcmask 7168
    %v692 = vsel %vm691, %v403, %v690
    %vm693 = vcmask 8192
    %694 = vst.msk [vmem:[#allocation4] sm:$0x1] %vm693, %v692
    // Predicated region
    $region42: #{tpu_custom_call.1} parent=1 // pred_check
      _
    $region43: #{tpu_custom_call.1} parent=1 // pred_check_branch
      %696 = sbr.rel (0) target = $region45
    $region44: #{tpu_custom_call.1} parent=1 // pred_region
      %s698 = ssub.s32 256, 256
      %699 = vsyncadd [#allocation3], %s698
      %s700 = sshll.u32 [#allocation2], 4
      %s701 = int_to_ptr.vmem [resolvable:$true] %s700
      %706 = dma.vmem_to_hbm [thread:$0]  %s701, 256, %s10, [#allocation3], 128, 128, 8
    $region45: #{tpu_custom_call.1} parent=1 // pred_fallthru
      _
    // Predicated region
    $region46: #{tpu_custom_call.1} parent=1 // pred_check
      _
    $region47: #{tpu_custom_call.1} parent=1 // pred_check_branch
      %708 = sbr.rel (0) target = $region49
    $region48: #{tpu_custom_call.1} parent=1 // pred_region
      %s710 = ssub.s32 16, 16
      %711 = vsyncadd [#allocation5], %s710
      %s713 = sshll.u32 [#allocation4], 4
      %s714 = int_to_ptr.vmem [resolvable:$true] %s713
      %716 = dma.vmem_to_hbm [thread:$0]  %s714, 16, %s11, [#allocation5]
    $region49: #{tpu_custom_call.1} parent=1 // pred_fallthru
      _
    // Predicated region
    $region50: #{tpu_custom_call.1} parent=1 // pred_check
      _
    $region51: #{tpu_custom_call.1} parent=1 // pred_check_branch
      %718 = sbr.rel (0) target = $region53
    $region52: #{tpu_custom_call.1} parent=1 // pred_region
      %719 = dma.done [#allocation3], 256
    $region53: #{tpu_custom_call.1} parent=1 // pred_fallthru
      _
    // Predicated region
    $region54: #{tpu_custom_call.1} parent=1 // pred_check
      _
    $region55: #{tpu_custom_call.1} parent=1 // pred_check_branch
      %721 = sbr.rel (0) target = $region57
    $region56: #{tpu_custom_call.1} parent=1 // pred_region
      %722 = dma.done [#allocation5], 16
    $region57: #{tpu_custom_call.1} parent=1 // pred_fallthru
      _
    %723 = vsyncpa [#allocation3], 1
    %724 = vsyncpa [#allocation5], 1

</llo_original>
